<compile_context>
chip_gen: v7x
topology: tpu7x:2x2x1
jax: 0.10.0
libtpu: 0.0.40
codegen_flags: <defaults>
</compile_context>

<pallas_src>
import functools

import jax
import jax.numpy as jnp
from jax.experimental import pallas as pl
from jax.experimental.pallas import tpu as pltpu

# ----------------------------- configuration --------------------------------
B = 2            # batch
N = 256          # signal length ("shape" arg of the module)
L = 32           # first-order (time) filter length
HOP = 8          # temporal frame hop
T1 = N // HOP    # frames after first-order conv           -> 32
J, Q1 = 4, 4
K1 = J * Q1      # number of first-order filters           -> 16
J_FR, Q_FR = 4, 1
P = J_FR * Q_FR  # number of frequential filters (paths)   -> 4
L_FR = 8         # frequential filter length
A = 4            # temporal averaging window ("T" arg)
TOUT = T1 // A   # output time bins                        -> 8
PF = P * K1      # paths * freq bins                       -> 64
P_NORM = 2       # "p" arg of the module
S2 = 2 * B       # stacked {x, x_target} x batch           -> 4
LANES = S2 * T1  # packed lane width                       -> 128


# ------------------------- deterministic filterbanks ------------------------
def make_morlet_bank(length: int, n_filters: int):
    """Deterministic Morlet-ish complex filterbank, returned as (K, length)."""
    t = jnp.arange(length, dtype=jnp.float32) - (length - 1) / 2.0
    sigma = length / 6.0
    env = jnp.exp(-0.5 * (t / sigma) ** 2)
    freqs = jnp.arange(1, n_filters + 1, dtype=jnp.float32) / (2.0 * (n_filters + 1))
    phase = 2.0 * jnp.pi * freqs[:, None] * t[None, :]
    wr = env[None, :] * jnp.cos(phase)
    wi = env[None, :] * jnp.sin(phase)
    norm = jnp.sqrt(jnp.sum(wr * wr + wi * wi, axis=1, keepdims=True))
    return wr / norm, wi / norm


def make_freq_conv_matrices():
    """Toeplitz ('same' conv along the K1 frequency axis) -> (P*K1, K1)."""
    fr_r, fr_i = make_morlet_bank(L_FR, P)                       # (P, L_FR)
    half = L_FR // 2
    f_idx = jnp.arange(K1)[:, None]
    k_idx = jnp.arange(K1)[None, :]
    tap = k_idx - f_idx + half                                   # (K1, K1)
    valid = (tap >= 0) & (tap < L_FR)
    tap_c = jnp.clip(tap, 0, L_FR - 1)
    cr = jnp.where(valid[None, :, :], fr_r[:, tap_c], 0.0)       # (P, K1, K1)
    ci = jnp.where(valid[None, :, :], fr_i[:, tap_c], 0.0)
    return cr.reshape(PF, K1), ci.reshape(PF, K1)


def make_avg_matrix():
    """Block-averaging matrix (T1, TOUT) with 1/A entries."""
    rows = jnp.arange(T1)[:, None] // A
    cols = jnp.arange(TOUT)[None, :]
    return (rows == cols).astype(jnp.float32) / float(A)


WR_T, WI_T = make_morlet_bank(L, K1)          # (K1, L)  real / imag time filters
CR, CI = make_freq_conv_matrices()            # (PF, K1) real / imag freq conv
AVG = make_avg_matrix()                       # (T1, TOUT)

# ---- fused constants for the single-kernel layout ---------------------------
WRI = jnp.concatenate([WR_T, WI_T], axis=0)                      # (2*K1, L)  = (32, 32)
CRI = jnp.concatenate([CR, CI], axis=0)                          # (2*PF, K1) = (128, 16)

# Block-diagonal averaging over the packed (signal, batch, time) lane axis,
# folded with the (target - x) difference:  M = AVG_blockdiag @ DIFF.
_AVG_BIG = jnp.kron(jnp.eye(S2, dtype=jnp.float32), AVG)         # (128, S2*TOUT=32)
_SIGN = jnp.array([[-1.0], [1.0]], dtype=jnp.float32)            # x -> -1, target -> +1
_DIFF = jnp.kron(_SIGN, jnp.eye(B * TOUT, dtype=jnp.float32))    # (32, B*TOUT=16)
MDIFF = _AVG_BIG @ _DIFF                                         # (128, 16)

# Selection matrices for the per-(path, batch) norm reduction.
ROWSEL = jnp.kron(jnp.eye(P, dtype=jnp.float32),
                  jnp.ones((1, K1), dtype=jnp.float32))          # (P, PF)       = (4, 64)
COLSEL = jnp.kron(jnp.eye(B, dtype=jnp.float32),
                  jnp.ones((TOUT, 1), dtype=jnp.float32))        # (B*TOUT, B)   = (16, 2)


# ------------------------------ glue: framing --------------------------------
def frame_signal_stacked(xs):
    """xs: (S2, N) -> (L, S2*T1) packed lane-dense frames, grouped (signal, batch, t)."""
    pad = L // 2
    xp = jnp.pad(xs, ((0, 0), (pad, pad)))
    idx = jnp.arange(T1)[:, None] * HOP + jnp.arange(L)[None, :]   # (T1, L)
    patches = xp[:, idx]                                           # (S2, T1, L)
    return jnp.transpose(patches, (2, 0, 1)).reshape(L, S2 * T1).astype(jnp.float32)


# --------------------------- fused Pallas kernel ------------------------------
def _fused_kernel(pT_ref, wri_ref, cri_ref, m_ref, rsel_ref, csel_ref, out_ref, *, p):
    pT = pT_ref[...]                                               # (L, 128)
    # first-order time scattering: stacked complex conv (one MXU push) + modulus
    y1 = jnp.dot(wri_ref[...], pT, preferred_element_type=jnp.float32)   # (2*K1, 128)
    ar = y1[:K1]
    ai = y1[K1:]
    u1 = jnp.sqrt(ar * ar + ai * ai)                               # (K1, 128)
    # frequential scattering ("joint"): stacked complex conv along K1 + modulus
    y2 = jnp.dot(cri_ref[...], u1, preferred_element_type=jnp.float32)   # (2*PF, 128)
    vr = y2[:PF]
    vi = y2[PF:]
    u2 = jnp.sqrt(vr * vr + vi * vi)                               # (PF, 128)
    # temporal averaging folded with (target - x) difference
    d = jnp.dot(u2, m_ref[...], preferred_element_type=jnp.float32)      # (PF, B*TOUT)
    if p == 2:
        dp = d * d
    else:
        dp = jnp.abs(d) ** p
    # sum over freq (per path) and over time (per batch) via selection matmuls
    per_path = jnp.dot(rsel_ref[...], dp, preferred_element_type=jnp.float32)   # (P, B*TOUT)
    per_bp = jnp.dot(per_path, csel_ref[...], preferred_element_type=jnp.float32)  # (P, B)
    if p == 2:
        dist = jnp.sqrt(per_bp)
    else:
        dist = per_bp ** (1.0 / p)
    out_ref[...] = jnp.sum(dist, keepdims=True) * (1.0 / float(P * B))


def _fused_call(pT, p=P_NORM):
    return pl.pallas_call(
        functools.partial(_fused_kernel, p=p),
        out_shape=jax.ShapeDtypeStruct((1, 1), jnp.float32),
        grid_spec=pltpu.PrefetchScalarGridSpec(
            num_scalar_prefetch=0,
            grid=(1,),
            in_specs=[
                pl.BlockSpec((L, LANES), lambda i: (0, 0)),
                pl.BlockSpec((2 * K1, L), lambda i: (0, 0)),
                pl.BlockSpec((2 * PF, K1), lambda i: (0, 0)),
                pl.BlockSpec((LANES, B * TOUT), lambda i: (0, 0)),
                pl.BlockSpec((P, PF), lambda i: (0, 0)),
                pl.BlockSpec((B * TOUT, B), lambda i: (0, 0)),
            ],
            out_specs=pl.BlockSpec((1, 1), lambda i: (0, 0)),
        ),
        compiler_params=pltpu.CompilerParams(dimension_semantics=("arbitrary",)),
    )(pT, WRI, CRI, MDIFF, ROWSEL, COLSEL)


# ------------------------------- full forward --------------------------------
@jax.jit
def jtfst_loss(x, x_target):
    """x, x_target: (B, 1, N) -> scalar  (mirrors JTFSTLoss.forward, format='joint')."""
    assert x.ndim == x_target.ndim == 3
    assert x.shape[1] == x_target.shape[1] == 1
    xs = jnp.concatenate([x[:, 0, :], x_target[:, 0, :]], axis=0)   # (2B, N)
    pT = frame_signal_stacked(xs)                                   # (L, 2B*T1) = (32, 128)
    res = _fused_call(pT)
    return res[0, 0]


# ------------------------------ pure-JAX reference ---------------------------
def _jtfs_ref(x2d):
    pad = L // 2
    xp = jnp.pad(x2d, ((0, 0), (pad, pad)))
    idx = jnp.arange(T1)[:, None] * HOP + jnp.arange(L)[None, :]
    patches = xp[:, idx]                                            # (B, T1, L)
    pT = jnp.transpose(patches, (0, 2, 1)).astype(jnp.float32)      # (B, L, T1)
    ar = jnp.einsum("kl,blt->bkt", WR_T, pT)
    ai = jnp.einsum("kl,blt->bkt", WI_T, pT)
    u1 = jnp.sqrt(ar * ar + ai * ai)
    vr = jnp.einsum("pk,bkt->bpt", CR, u1)
    vi = jnp.einsum("pk,bkt->bpt", CI, u1)
    u2 = jnp.sqrt(vr * vr + vi * vi)
    return jnp.einsum("bpt,to->bpo", u2, AVG)                       # (B, PF, TOUT)


def _loss_ref(x, x_target):
    sx = _jtfs_ref(x[:, 0, :]).reshape(B, P, K1 * TOUT)
    st = _jtfs_ref(x_target[:, 0, :]).reshape(B, P, K1 * TOUT)
    dist = jnp.sqrt(jnp.sum((st - sx) ** 2, axis=-1))
    return jnp.mean(dist)


# ------------------------------------ main ------------------------------------
if __name__ == "__main__":
    key = jax.random.PRNGKey(0)
    k1, k2 = jax.random.split(key)
    x = jax.random.normal(k1, (B, 1, N), dtype=jnp.float32)
    x_target = jax.random.normal(k2, (B, 1, N), dtype=jnp.float32)

    out = jtfst_loss(x, x_target)
    out = jax.block_until_ready(out)

    ref = _loss_ref(x, x_target)
    assert jnp.isfinite(out)
    assert jnp.allclose(out, ref, rtol=1e-4, atol=1e-4), (out, ref)

    print("KERNEL_OK")
</pallas_src>

<mosaic_0001>
module attributes {stable_mosaic.version = 11 : i64} {
  func.func @_fused_kernel(%arg0: i32, %arg1: memref<32x128xf32, #tpu.memory_space<vmem>>, %arg2: memref<32x32xf32, #tpu.memory_space<vmem>>, %arg3: memref<128x16xf32, #tpu.memory_space<vmem>>, %arg4: memref<128x16xf32, #tpu.memory_space<vmem>>, %arg5: memref<4x64xf32, #tpu.memory_space<vmem>>, %arg6: memref<16x2xf32, #tpu.memory_space<vmem>>, %arg7: memref<1x1xf32, #tpu.memory_space<vmem>>) attributes {dimension_semantics = [#tpu.dimension_semantics<arbitrary>], iteration_bounds = array<i64: 1>, scalar_prefetch = 0 : i64, scratch_operands = 0 : i64, tpu.core_type = #tpu.core_type<tc>, window_params = [{pipeline_mode = #tpu.pipeline_mode<synchronous>, transform_indices = @transform_0, window_bounds = array<i64: 32, 128>}, {pipeline_mode = #tpu.pipeline_mode<synchronous>, transform_indices = @transform_1, window_bounds = array<i64: 32, 32>}, {pipeline_mode = #tpu.pipeline_mode<synchronous>, transform_indices = @transform_2, window_bounds = array<i64: 128, 16>}, {pipeline_mode = #tpu.pipeline_mode<synchronous>, transform_indices = @transform_3, window_bounds = array<i64: 128, 16>}, {pipeline_mode = #tpu.pipeline_mode<synchronous>, transform_indices = @transform_4, window_bounds = array<i64: 4, 64>}, {pipeline_mode = #tpu.pipeline_mode<synchronous>, transform_indices = @transform_5, window_bounds = array<i64: 16, 2>}, {pipeline_mode = #tpu.pipeline_mode<synchronous>, transform_indices = @transform_6, window_bounds = array<i64: 1, 1>}]} {
    %c0 = arith.constant 0 : index
    %c0_0 = arith.constant 0 : index
    %0 = vector.load %arg1[%c0, %c0_0] : memref<32x128xf32, #tpu.memory_space<vmem>>, vector<32x128xf32>
    %c0_1 = arith.constant 0 : index
    %c0_2 = arith.constant 0 : index
    %1 = vector.load %arg2[%c0_1, %c0_2] : memref<32x32xf32, #tpu.memory_space<vmem>>, vector<32x32xf32>
    %cst = arith.constant dense<0.000000e+00> : vector<32x128xf32>
    %2 = tpu.matmul %1, %0, %cst {dimension_numbers = #tpu.dot_dimension_numbers<[1], [0], [0], [1], [0, 0, 1, 1], [], []>} : vector<32x32xf32>, vector<32x128xf32>, vector<32x128xf32> -> vector<32x128xf32>
    %3 = vector.extract_strided_slice %2 {offsets = [0, 0], sizes = [16, 128], strides = [1, 1]} : vector<32x128xf32> to vector<16x128xf32>
    %4 = vector.extract_strided_slice %2 {offsets = [16, 0], sizes = [16, 128], strides = [1, 1]} : vector<32x128xf32> to vector<16x128xf32>
    %5 = arith.mulf %3, %3 : vector<16x128xf32>
    %6 = arith.mulf %4, %4 : vector<16x128xf32>
    %7 = arith.addf %5, %6 : vector<16x128xf32>
    %8 = math.sqrt %7 : vector<16x128xf32>
    %c0_3 = arith.constant 0 : index
    %c0_4 = arith.constant 0 : index
    %9 = vector.load %arg3[%c0_3, %c0_4] : memref<128x16xf32, #tpu.memory_space<vmem>>, vector<128x16xf32>
    %cst_5 = arith.constant dense<0.000000e+00> : vector<128x128xf32>
    %10 = tpu.matmul %9, %8, %cst_5 {dimension_numbers = #tpu.dot_dimension_numbers<[1], [0], [0], [1], [0, 0, 1, 1], [], []>} : vector<128x16xf32>, vector<16x128xf32>, vector<128x128xf32> -> vector<128x128xf32>
    %11 = vector.extract_strided_slice %10 {offsets = [0, 0], sizes = [64, 128], strides = [1, 1]} : vector<128x128xf32> to vector<64x128xf32>
    %12 = vector.extract_strided_slice %10 {offsets = [64, 0], sizes = [64, 128], strides = [1, 1]} : vector<128x128xf32> to vector<64x128xf32>
    %13 = arith.mulf %11, %11 : vector<64x128xf32>
    %14 = arith.mulf %12, %12 : vector<64x128xf32>
    %15 = arith.addf %13, %14 : vector<64x128xf32>
    %16 = math.sqrt %15 : vector<64x128xf32>
    %c0_6 = arith.constant 0 : index
    %c0_7 = arith.constant 0 : index
    %17 = vector.load %arg4[%c0_6, %c0_7] : memref<128x16xf32, #tpu.memory_space<vmem>>, vector<128x16xf32>
    %cst_8 = arith.constant dense<0.000000e+00> : vector<64x16xf32>
    %18 = tpu.matmul %16, %17, %cst_8 {dimension_numbers = #tpu.dot_dimension_numbers<[1], [0], [0], [1], [0, 0, 1, 1], [], []>} : vector<64x128xf32>, vector<128x16xf32>, vector<64x16xf32> -> vector<64x16xf32>
    %19 = arith.mulf %18, %18 : vector<64x16xf32>
    %c0_9 = arith.constant 0 : index
    %c0_10 = arith.constant 0 : index
    %20 = vector.load %arg5[%c0_9, %c0_10] : memref<4x64xf32, #tpu.memory_space<vmem>>, vector<4x64xf32>
    %cst_11 = arith.constant dense<0.000000e+00> : vector<4x16xf32>
    %21 = tpu.matmul %20, %19, %cst_11 {dimension_numbers = #tpu.dot_dimension_numbers<[1], [0], [0], [1], [0, 0, 1, 1], [], []>} : vector<4x64xf32>, vector<64x16xf32>, vector<4x16xf32> -> vector<4x16xf32>
    %c0_12 = arith.constant 0 : index
    %c0_13 = arith.constant 0 : index
    %22 = vector.load %arg6[%c0_12, %c0_13] : memref<16x2xf32, #tpu.memory_space<vmem>>, vector<16x2xf32>
    %cst_14 = arith.constant dense<0.000000e+00> : vector<4x2xf32>
    %23 = tpu.matmul %21, %22, %cst_14 {dimension_numbers = #tpu.dot_dimension_numbers<[1], [0], [0], [1], [0, 0, 1, 1], [], []>} : vector<4x16xf32>, vector<16x2xf32>, vector<4x2xf32> -> vector<4x2xf32>
    %24 = math.sqrt %23 : vector<4x2xf32>
    %25 = vector.shape_cast %24 : vector<4x2xf32> to vector<1x4x2xf32>
    %cst_15 = arith.constant dense<0.000000e+00> : vector<1xf32>
    %26 = vector.multi_reduction <add>, %25, %cst_15 [1, 2] : vector<1x4x2xf32> to vector<1xf32>
    %27 = vector.shape_cast %26 : vector<1xf32> to vector<1x1x1xf32>
    %28 = vector.extract %27[0, 0, 0] : f32 from vector<1x1x1xf32>
    %29 = vector.broadcast %28 : f32 to vector<1x1xf32>
    %cst_16 = arith.constant 1.250000e-01 : f32
    %30 = vector.broadcast %cst_16 : f32 to vector<1x1xf32>
    %31 = arith.mulf %29, %30 : vector<1x1xf32>
    %c0_17 = arith.constant 0 : index
    %c0_18 = arith.constant 0 : index
    %32 = vector.load %arg7[%c0_17, %c0_18] : memref<1x1xf32, #tpu.memory_space<vmem>>, vector<1x1xf32>
    tpu.vector_store %arg7[%c0_17, %c0_18], %31 {strides = array<i32>} : memref<1x1xf32, #tpu.memory_space<vmem>>, vector<1x1xf32>,
    return
  }
  func.func @transform_0(%arg0: i32) -> (i32, i32) {
    %c0_i32 = arith.constant 0 : i32
    %c0_i32_0 = arith.constant 0 : i32
    %c0_i32_1 = arith.constant 0 : i32
    return %c0_i32, %c0_i32_0 : i32, i32
  }
  func.func @transform_1(%arg0: i32) -> (i32, i32) {
    %c0_i32 = arith.constant 0 : i32
    %c0_i32_0 = arith.constant 0 : i32
    %c0_i32_1 = arith.constant 0 : i32
    return %c0_i32, %c0_i32_0 : i32, i32
  }
  func.func @transform_2(%arg0: i32) -> (i32, i32) {
    %c0_i32 = arith.constant 0 : i32
    %c0_i32_0 = arith.constant 0 : i32
    %c0_i32_1 = arith.constant 0 : i32
    return %c0_i32, %c0_i32_0 : i32, i32
  }
  func.func @transform_3(%arg0: i32) -> (i32, i32) {
    %c0_i32 = arith.constant 0 : i32
    %c0_i32_0 = arith.constant 0 : i32
    %c0_i32_1 = arith.constant 0 : i32
    return %c0_i32, %c0_i32_0 : i32, i32
  }
  func.func @transform_4(%arg0: i32) -> (i32, i32) {
    %c0_i32 = arith.constant 0 : i32
    %c0_i32_0 = arith.constant 0 : i32
    %c0_i32_1 = arith.constant 0 : i32
    return %c0_i32, %c0_i32_0 : i32, i32
  }
  func.func @transform_5(%arg0: i32) -> (i32, i32) {
    %c0_i32 = arith.constant 0 : i32
    %c0_i32_0 = arith.constant 0 : i32
    %c0_i32_1 = arith.constant 0 : i32
    return %c0_i32, %c0_i32_0 : i32, i32
  }
  func.func @transform_6(%arg0: i32) -> (i32, i32) {
    %c0_i32 = arith.constant 0 : i32
    %c0_i32_0 = arith.constant 0 : i32
    %c0_i32_1 = arith.constant 0 : i32
    return %c0_i32, %c0_i32_0 : i32, i32
  }
}

</mosaic_0001>

<llo_original>
// kernel: jtfst_loss.1
$region0: #{jtfst_loss.1}
  #allocation0 [shape = 'u32[]', space=smem, size = 0x4, offset = 0x4, fixed_abs, tag = 'smem constant byte address 0x4 - core index']
  #allocation1 [shape = 'u32[144,128]{1,0:T(1,128)}', space=vmem, size = 0x12000, scoped, tag = 'internal scratch']
  %s0 = inlined_call_operand.vmem [shape: f32[32,128], index: 0, kind: input, shape index: {}]
  %s1 = inlined_call_operand.vmem [shape: f32[32,32], index: 1, kind: input, shape index: {}]
  %s2 = inlined_call_operand.vmem [shape: f32[128,16], index: 2, kind: input, shape index: {}]
  %s3 = inlined_call_operand.vmem [shape: f32[128,16], index: 3, kind: input, shape index: {}]
  %s4 = inlined_call_operand.vmem [shape: f32[4,64], index: 4, kind: input, shape index: {}]
  %s5 = inlined_call_operand.vmem [shape: f32[16,2], index: 5, kind: input, shape index: {}]
  %s6 = inlined_call_operand.hbm [shape: f32[1,1], index: 6, kind: output, shape index: {}]
  %s7 = sld [smem:[#allocation0]]
  $region34: #{jtfst_loss.1} parent=0
    _
  %s9 = ssub.s32 1, %s7
  %s10 = scalar_select 0, %s9, %s7
  $region1: #{jtfst_loss.1} parent=0
    #allocation2 [shape = 'u8[512]{0}', space=vmem, size = 0x400, scoped, tag = 'output window, operand 0, single buffered']
    #allocation3 [shape = 's32[1]{0}', space=sflag, size = 0x4, scoped, tag = 'scoped memory for jtfst_loss.1']
    %11 = vsyncpa [#allocation3], 0
    // Predicated region
    $region2: #{jtfst_loss.1} parent=1 // pred_check
      _
    $region3: #{jtfst_loss.1} parent=1 // pred_check_branch
      %13 = sbr.rel (0) target = $region5
    $region4: #{jtfst_loss.1} parent=1 // pred_region
      _
    $region5: #{jtfst_loss.1} parent=1 // pred_fallthru
      _
    // Predicated region
    $region6: #{jtfst_loss.1} parent=1 // pred_check
      _
    $region7: #{jtfst_loss.1} parent=1 // pred_check_branch
      %15 = sbr.rel (0) target = $region9
    $region8: #{jtfst_loss.1} parent=1 // pred_region
      _
    $region9: #{jtfst_loss.1} parent=1 // pred_fallthru
      _
    // Predicated region
    $region10: #{jtfst_loss.1} parent=1 // pred_check
      _
    $region11: #{jtfst_loss.1} parent=1 // pred_check_branch
      %17 = sbr.rel (0) target = $region13
    $region12: #{jtfst_loss.1} parent=1 // pred_region
      _
    $region13: #{jtfst_loss.1} parent=1 // pred_fallthru
      _
    // Predicated region
    $region14: #{jtfst_loss.1} parent=1 // pred_check
      _
    $region15: #{jtfst_loss.1} parent=1 // pred_check_branch
      %19 = sbr.rel (0) target = $region17
    $region16: #{jtfst_loss.1} parent=1 // pred_region
      _
    $region17: #{jtfst_loss.1} parent=1 // pred_fallthru
      _
    // Predicated region
    $region18: #{jtfst_loss.1} parent=1 // pred_check
      _
    $region19: #{jtfst_loss.1} parent=1 // pred_check_branch
      %21 = sbr.rel (0) target = $region21
    $region20: #{jtfst_loss.1} parent=1 // pred_region
      _
    $region21: #{jtfst_loss.1} parent=1 // pred_fallthru
      _
    // Predicated region
    $region22: #{jtfst_loss.1} parent=1 // pred_check
      _
    $region23: #{jtfst_loss.1} parent=1 // pred_check_branch
      %23 = sbr.rel (0) target = $region25
    $region24: #{jtfst_loss.1} parent=1 // pred_region
      _
    $region25: #{jtfst_loss.1} parent=1 // pred_fallthru
      _
    %v24 = vld [vmem:[%s0] sm:$0xff]
    %v25 = vld [vmem:[%s0 + $0x8] sm:$0xff]
    %v26 = vld [vmem:[%s0 + $0x10] sm:$0xff]
    %v27 = vld [vmem:[%s0 + $0x18] sm:$0xff]
    %v28 = vld [vmem:[%s1] sm:$0xff]
    %v29 = vld [vmem:[%s1 + $0x8] sm:$0xff]
    %v30 = vld [vmem:[%s1 + $0x10] sm:$0xff]
    %v31 = vld [vmem:[%s1 + $0x18] sm:$0xff]
    %vm32 = vcmask 261120
    %v34 = vsel %vm32, %v28, 0
    %v37 = vsel %vm32, %v29, 0
    %v40 = vsel %vm32, %v30, 0
    %v43 = vsel %vm32, %v31, 0
    %45 = vmatprep.subr.mxu0 0.0
    %46 = vmatpush1.msra.mxu0 %v24
    %47 = vmatprep.subr.mxu0 0.0
    %48 = vmatpush1.msra.mxu0 %v25
    %49 = vmatprep.subr.mxu0 0.0
    %50 = vmatpush1.msra.mxu0 %v26
    %51 = vmatprep.subr.mxu0 0.0
    %52 = vmatpush1.msra.mxu0 %v27
    %53 = vmatprep.subr.mxu0 0.0
    %54 = vmatpush1.msra.mxu0 0.0
    %55 = vmatprep.subr.mxu0 0.0
    %56 = vmatpush1.msra.mxu0 0.0
    %57 = vmatprep.subr.mxu0 0.0
    %58 = vmatpush1.msra.mxu0 0.0
    %59 = vmatprep.subr.mxu0 0.0
    %60 = vmatpush1.msra.mxu0 0.0
    %61 = vmatprep.subr.mxu0 0.0
    %62 = vmatpush1.msra.mxu0 0.0
    %63 = vmatprep.subr.mxu0 0.0
    %64 = vmatpush1.msra.mxu0 0.0
    %65 = vmatprep.subr.mxu0 0.0
    %66 = vmatpush1.msra.mxu0 0.0
    %67 = vmatprep.subr.mxu0 0.0
    %68 = vmatpush1.msra.mxu0 0.0
    %69 = vmatprep.subr.mxu0 0.0
    %70 = vmatpush1.msra.mxu0 0.0
    %71 = vmatprep.subr.mxu0 0.0
    %72 = vmatpush1.msra.mxu0 0.0
    %73 = vmatprep.subr.mxu0 0.0
    %74 = vmatpush1.msra.mxu0 0.0
    %75 = vmatprep.subr.mxu0 0.0
    %76 = vmatpush1.msra.mxu0 0.0
    %77 = vmatprep.subr.mxu0 0.0
    %78 = vmatpush1.msra.mxu0 0.0
    %79 = vmatprep.subr.mxu0 0.0
    %80 = vmatpush1.msra.mxu0 0.0
    %81 = vmatprep.subr.mxu0 0.0
    %82 = vmatpush1.msra.mxu0 0.0
    %83 = vmatprep.subr.mxu0 0.0
    %84 = vmatpush1.msra.mxu0 0.0
    %85 = vmatprep.subr.mxu0 0.0
    %86 = vmatpush1.msra.mxu0 0.0
    %87 = vmatprep.subr.mxu0 0.0
    %88 = vmatpush1.msra.mxu0 0.0
    %89 = vmatprep.subr.mxu0 0.0
    %90 = vmatpush1.msra.mxu0 0.0
    %91 = vmatprep.subr.mxu0 0.0
    %92 = vmatpush1.msra.mxu0 0.0
    %93 = vmatprep.subr.mxu0 0.0
    %94 = vmatpush1.msra.mxu0 0.0
    %95 = vmatprep.subr.mxu0 0.0
    %96 = vmatpush1.msra.mxu0 0.0
    %97 = vmatprep.subr.mxu0 0.0
    %98 = vmatpush1.msra.mxu0 0.0
    %99 = vmatprep.subr.mxu0 0.0
    %100 = vmatpush1.msra.mxu0 0.0
    %101 = vmatprep.subr.mxu0 0.0
    %102 = vmatpush1.msra.mxu0 0.0
    %103 = vmatprep.subr.mxu0 0.0
    %104 = vmatpush1.msra.mxu0 0.0
    %105 = vmatprep.subr.mxu0 0.0
    %106 = vmatpush1.msra.mxu0 0.0
    %107 = vmatprep.subr.mxu0 0.0
    %108 = vmatpush1.msra.mxu0 0.0
    %109 = vmatprep.mubr.f32.mxu0 0.0
    %110 = vmatmul.mubr.f32.gmra.mrb[0].mxu0 %v34
    %v111 = vpop.f32.mrb[0].mxu0
    %v112 = vadd.f32 0.0, %v111
    %v113 = vpop.f32.mrb[0].mxu0
    %114 = vmatprep.mubr.f32.mxu0 0.0
    %115 = vmatmul.mubr.f32.gmra.mrb[0].mxu0 %v37
    %v116 = vpop.f32.mrb[0].mxu0
    %v117 = vadd.f32 0.0, %v116
    %v118 = vpop.f32.mrb[0].mxu0
    %119 = vmatprep.mubr.f32.mxu0 0.0
    %120 = vmatmul.mubr.f32.gmra.mrb[0].mxu0 %v40
    %v121 = vpop.f32.mrb[0].mxu0
    %v122 = vadd.f32 0.0, %v121
    %v123 = vpop.f32.mrb[0].mxu0
    %124 = vmatprep.mubr.f32.mxu0 0.0
    %125 = vmatmul.mubr.f32.gmra.mrb[0].mxu0 %v43
    %v126 = vpop.f32.mrb[0].mxu0
    %v127 = vadd.f32 0.0, %v126
    %v128 = vpop.f32.mrb[0].mxu0
    %129 = vdwg.mxu0
    %v130 = vmul.f32 %v112, %v112
    %v131 = vmul.f32 %v117, %v117
    %v132 = vmul.f32 %v122, %v122
    %v133 = vmul.f32 %v127, %v127
    %v134 = vadd.f32 %v130, %v132
    %v135 = vadd.f32 %v131, %v133
    %v136 = vrsqrt.pop %v134
    %v137 = vmul.f32 %v134, %v136
    %vm138 = vcmp.eq.f32.partialorder %v134, inf
    %v139 = vsel %vm138, %v134, %v137
    %vm140 = vcmp.eq.f32.partialorder %v134, 0.0
    %v141 = vand.u32 %v134, 2147483648
    %v142 = vsel %vm140, %v141, %v139
    %v143 = vrsqrt.pop %v135
    %v144 = vmul.f32 %v135, %v143
    %vm145 = vcmp.eq.f32.partialorder %v135, inf
    %v146 = vsel %vm145, %v135, %v144
    %vm147 = vcmp.eq.f32.partialorder %v135, 0.0
    %v148 = vand.u32 %v135, 2147483648
    %v149 = vsel %vm147, %v148, %v146
    %v150 = vld [vmem:[%s2] sm:$0xff]
    %v151 = vld [vmem:[%s2 + $0x8] sm:$0xff]
    %v152 = vld [vmem:[%s2 + $0x10] sm:$0xff]
    %v153 = vld [vmem:[%s2 + $0x18] sm:$0xff]
    %v154 = vld [vmem:[%s2 + $0x20] sm:$0xff]
    %v155 = vld [vmem:[%s2 + $0x28] sm:$0xff]
    %v156 = vld [vmem:[%s2 + $0x30] sm:$0xff]
    %v157 = vld [vmem:[%s2 + $0x38] sm:$0xff]
    %v158 = vld [vmem:[%s2 + $0x40] sm:$0xff]
    %v159 = vld [vmem:[%s2 + $0x48] sm:$0xff]
    %v160 = vld [vmem:[%s2 + $0x50] sm:$0xff]
    %v161 = vld [vmem:[%s2 + $0x58] sm:$0xff]
    %v162 = vld [vmem:[%s2 + $0x60] sm:$0xff]
    %v163 = vld [vmem:[%s2 + $0x68] sm:$0xff]
    %v164 = vld [vmem:[%s2 + $0x70] sm:$0xff]
    %v165 = vld [vmem:[%s2 + $0x78] sm:$0xff]
    %vm166 = vcmask 130048
    %v168 = vsel %vm166, %v150, 0
    %v171 = vsel %vm166, %v151, 0
    %v174 = vsel %vm166, %v152, 0
    %v177 = vsel %vm166, %v153, 0
    %v180 = vsel %vm166, %v154, 0
    %v183 = vsel %vm166, %v155, 0
    %v186 = vsel %vm166, %v156, 0
    %v189 = vsel %vm166, %v157, 0
    %v192 = vsel %vm166, %v158, 0
    %v195 = vsel %vm166, %v159, 0
    %v198 = vsel %vm166, %v160, 0
    %v201 = vsel %vm166, %v161, 0
    %v204 = vsel %vm166, %v162, 0
    %v207 = vsel %vm166, %v163, 0
    %v210 = vsel %vm166, %v164, 0
    %v213 = vsel %vm166, %v165, 0
    %215 = vmatprep.subr.mxu0 0.0
    %216 = vmatpush1.msra.mxu0 %v142
    %217 = vmatprep.subr.mxu0 0.0
    %218 = vmatpush1.msra.mxu0 %v149
    %219 = vmatprep.subr.mxu0 0.0
    %220 = vmatpush1.msra.mxu0 0.0
    %221 = vmatprep.subr.mxu0 0.0
    %222 = vmatpush1.msra.mxu0 0.0
    %223 = vmatprep.subr.mxu0 0.0
    %224 = vmatpush1.msra.mxu0 0.0
    %225 = vmatprep.subr.mxu0 0.0
    %226 = vmatpush1.msra.mxu0 0.0
    %227 = vmatprep.subr.mxu0 0.0
    %228 = vmatpush1.msra.mxu0 0.0
    %229 = vmatprep.subr.mxu0 0.0
    %230 = vmatpush1.msra.mxu0 0.0
    %231 = vmatprep.subr.mxu0 0.0
    %232 = vmatpush1.msra.mxu0 0.0
    %233 = vmatprep.subr.mxu0 0.0
    %234 = vmatpush1.msra.mxu0 0.0
    %235 = vmatprep.subr.mxu0 0.0
    %236 = vmatpush1.msra.mxu0 0.0
    %237 = vmatprep.subr.mxu0 0.0
    %238 = vmatpush1.msra.mxu0 0.0
    %239 = vmatprep.subr.mxu0 0.0
    %240 = vmatpush1.msra.mxu0 0.0
    %241 = vmatprep.subr.mxu0 0.0
    %242 = vmatpush1.msra.mxu0 0.0
    %243 = vmatprep.subr.mxu0 0.0
    %244 = vmatpush1.msra.mxu0 0.0
    %245 = vmatprep.subr.mxu0 0.0
    %246 = vmatpush1.msra.mxu0 0.0
    %247 = vmatprep.subr.mxu0 0.0
    %248 = vmatpush1.msra.mxu0 0.0
    %249 = vmatprep.subr.mxu0 0.0
    %250 = vmatpush1.msra.mxu0 0.0
    %251 = vmatprep.subr.mxu0 0.0
    %252 = vmatpush1.msra.mxu0 0.0
    %253 = vmatprep.subr.mxu0 0.0
    %254 = vmatpush1.msra.mxu0 0.0
    %255 = vmatprep.subr.mxu0 0.0
    %256 = vmatpush1.msra.mxu0 0.0
    %257 = vmatprep.subr.mxu0 0.0
    %258 = vmatpush1.msra.mxu0 0.0
    %259 = vmatprep.subr.mxu0 0.0
    %260 = vmatpush1.msra.mxu0 0.0
    %261 = vmatprep.subr.mxu0 0.0
    %262 = vmatpush1.msra.mxu0 0.0
    %263 = vmatprep.subr.mxu0 0.0
    %264 = vmatpush1.msra.mxu0 0.0
    %265 = vmatprep.subr.mxu0 0.0
    %266 = vmatpush1.msra.mxu0 0.0
    %267 = vmatprep.subr.mxu0 0.0
    %268 = vmatpush1.msra.mxu0 0.0
    %269 = vmatprep.subr.mxu0 0.0
    %270 = vmatpush1.msra.mxu0 0.0
    %271 = vmatprep.subr.mxu0 0.0
    %272 = vmatpush1.msra.mxu0 0.0
    %273 = vmatprep.subr.mxu0 0.0
    %274 = vmatpush1.msra.mxu0 0.0
    %275 = vmatprep.subr.mxu0 0.0
    %276 = vmatpush1.msra.mxu0 0.0
    %277 = vmatprep.subr.mxu0 0.0
    %278 = vmatpush1.msra.mxu0 0.0
    %279 = vmatprep.mubr.f32.mxu0 0.0
    %280 = vmatmul.mubr.f32.gmra.mrb[0].mxu0 %v168
    %v281 = vpop.f32.mrb[0].mxu0
    %v282 = vadd.f32 0.0, %v281
    %v283 = vpop.f32.mrb[0].mxu0
    %284 = vmatprep.mubr.f32.mxu0 0.0
    %285 = vmatmul.mubr.f32.gmra.mrb[0].mxu0 %v171
    %v286 = vpop.f32.mrb[0].mxu0
    %v287 = vadd.f32 0.0, %v286
    %v288 = vpop.f32.mrb[0].mxu0
    %289 = vmatprep.mubr.f32.mxu0 0.0
    %290 = vmatmul.mubr.f32.gmra.mrb[0].mxu0 %v174
    %v291 = vpop.f32.mrb[0].mxu0
    %v292 = vadd.f32 0.0, %v291
    %v293 = vpop.f32.mrb[0].mxu0
    %294 = vmatprep.mubr.f32.mxu0 0.0
    %295 = vmatmul.mubr.f32.gmra.mrb[0].mxu0 %v177
    %v296 = vpop.f32.mrb[0].mxu0
    %v297 = vadd.f32 0.0, %v296
    %v298 = vpop.f32.mrb[0].mxu0
    %299 = vmatprep.mubr.f32.mxu0 0.0
    %300 = vmatmul.mubr.f32.gmra.mrb[0].mxu0 %v180
    %v301 = vpop.f32.mrb[0].mxu0
    %v302 = vadd.f32 0.0, %v301
    %v303 = vpop.f32.mrb[0].mxu0
    %304 = vmatprep.mubr.f32.mxu0 0.0
    %305 = vmatmul.mubr.f32.gmra.mrb[0].mxu0 %v183
    %v306 = vpop.f32.mrb[0].mxu0
    %v307 = vadd.f32 0.0, %v306
    %v308 = vpop.f32.mrb[0].mxu0
    %309 = vmatprep.mubr.f32.mxu0 0.0
    %310 = vmatmul.mubr.f32.gmra.mrb[0].mxu0 %v186
    %v311 = vpop.f32.mrb[0].mxu0
    %v312 = vadd.f32 0.0, %v311
    %v313 = vpop.f32.mrb[0].mxu0
    %314 = vmatprep.mubr.f32.mxu0 0.0
    %315 = vmatmul.mubr.f32.gmra.mrb[0].mxu0 %v189
    %v316 = vpop.f32.mrb[0].mxu0
    %v317 = vadd.f32 0.0, %v316
    %v318 = vpop.f32.mrb[0].mxu0
    %319 = vmatprep.mubr.f32.mxu0 0.0
    %320 = vmatmul.mubr.f32.gmra.mrb[0].mxu0 %v192
    %v321 = vpop.f32.mrb[0].mxu0
    %v322 = vadd.f32 0.0, %v321
    %v323 = vpop.f32.mrb[0].mxu0
    %324 = vmatprep.mubr.f32.mxu0 0.0
    %325 = vmatmul.mubr.f32.gmra.mrb[0].mxu0 %v195
    %v326 = vpop.f32.mrb[0].mxu0
    %v327 = vadd.f32 0.0, %v326
    %v328 = vpop.f32.mrb[0].mxu0
    %329 = vmatprep.mubr.f32.mxu0 0.0
    %330 = vmatmul.mubr.f32.gmra.mrb[0].mxu0 %v198
    %v331 = vpop.f32.mrb[0].mxu0
    %v332 = vadd.f32 0.0, %v331
    %v333 = vpop.f32.mrb[0].mxu0
    %334 = vmatprep.mubr.f32.mxu0 0.0
    %335 = vmatmul.mubr.f32.gmra.mrb[0].mxu0 %v201
    %v336 = vpop.f32.mrb[0].mxu0
    %v337 = vadd.f32 0.0, %v336
    %v338 = vpop.f32.mrb[0].mxu0
    %339 = vmatprep.mubr.f32.mxu0 0.0
    %340 = vmatmul.mubr.f32.gmra.mrb[0].mxu0 %v204
    %v341 = vpop.f32.mrb[0].mxu0
    %v342 = vadd.f32 0.0, %v341
    %v343 = vpop.f32.mrb[0].mxu0
    %344 = vmatprep.mubr.f32.mxu0 0.0
    %345 = vmatmul.mubr.f32.gmra.mrb[0].mxu0 %v207
    %v346 = vpop.f32.mrb[0].mxu0
    %v347 = vadd.f32 0.0, %v346
    %v348 = vpop.f32.mrb[0].mxu0
    %349 = vmatprep.mubr.f32.mxu0 0.0
    %350 = vmatmul.mubr.f32.gmra.mrb[0].mxu0 %v210
    %v351 = vpop.f32.mrb[0].mxu0
    %v352 = vadd.f32 0.0, %v351
    %v353 = vpop.f32.mrb[0].mxu0
    %354 = vmatprep.mubr.f32.mxu0 0.0
    %355 = vmatmul.mubr.f32.gmra.mrb[0].mxu0 %v213
    %v356 = vpop.f32.mrb[0].mxu0
    %v357 = vadd.f32 0.0, %v356
    %v358 = vpop.f32.mrb[0].mxu0
    %359 = vdwg.mxu0
    %v360 = vmul.f32 %v282, %v282
    %v361 = vmul.f32 %v287, %v287
    %v362 = vmul.f32 %v292, %v292
    %v363 = vmul.f32 %v297, %v297
    %v364 = vmul.f32 %v302, %v302
    %v365 = vmul.f32 %v307, %v307
    %v366 = vmul.f32 %v312, %v312
    %v367 = vmul.f32 %v317, %v317
    %v368 = vmul.f32 %v322, %v322
    %v369 = vmul.f32 %v327, %v327
    %v370 = vmul.f32 %v332, %v332
    %v371 = vmul.f32 %v337, %v337
    %v372 = vmul.f32 %v342, %v342
    %v373 = vmul.f32 %v347, %v347
    %v374 = vmul.f32 %v352, %v352
    %v375 = vmul.f32 %v357, %v357
    %v376 = vadd.f32 %v360, %v368
    %v377 = vadd.f32 %v361, %v369
    %v378 = vadd.f32 %v362, %v370
    %v379 = vadd.f32 %v363, %v371
    %v380 = vadd.f32 %v364, %v372
    %v381 = vadd.f32 %v365, %v373
    %v382 = vadd.f32 %v366, %v374
    %v383 = vadd.f32 %v367, %v375
    %v384 = vrsqrt.pop %v376
    %v385 = vmul.f32 %v376, %v384
    %vm386 = vcmp.eq.f32.partialorder %v376, inf
    %v387 = vsel %vm386, %v376, %v385
    %vm388 = vcmp.eq.f32.partialorder %v376, 0.0
    %v389 = vand.u32 %v376, 2147483648
    %v390 = vsel %vm388, %v389, %v387
    %v391 = vrsqrt.pop %v377
    %v392 = vmul.f32 %v377, %v391
    %vm393 = vcmp.eq.f32.partialorder %v377, inf
    %v394 = vsel %vm393, %v377, %v392
    %vm395 = vcmp.eq.f32.partialorder %v377, 0.0
    %v396 = vand.u32 %v377, 2147483648
    %v397 = vsel %vm395, %v396, %v394
    %v398 = vrsqrt.pop %v378
    %v399 = vmul.f32 %v378, %v398
    %vm400 = vcmp.eq.f32.partialorder %v378, inf
    %v401 = vsel %vm400, %v378, %v399
    %vm402 = vcmp.eq.f32.partialorder %v378, 0.0
    %v403 = vand.u32 %v378, 2147483648
    %v404 = vsel %vm402, %v403, %v401
    %v405 = vrsqrt.pop %v379
    %v406 = vmul.f32 %v379, %v405
    %vm407 = vcmp.eq.f32.partialorder %v379, inf
    %v408 = vsel %vm407, %v379, %v406
    %vm409 = vcmp.eq.f32.partialorder %v379, 0.0
    %v410 = vand.u32 %v379, 2147483648
    %v411 = vsel %vm409, %v410, %v408
    %v412 = vrsqrt.pop %v380
    %v413 = vmul.f32 %v380, %v412
    %vm414 = vcmp.eq.f32.partialorder %v380, inf
    %v415 = vsel %vm414, %v380, %v413
    %vm416 = vcmp.eq.f32.partialorder %v380, 0.0
    %v417 = vand.u32 %v380, 2147483648
    %v418 = vsel %vm416, %v417, %v415
    %v419 = vrsqrt.pop %v381
    %v420 = vmul.f32 %v381, %v419
    %vm421 = vcmp.eq.f32.partialorder %v381, inf
    %v422 = vsel %vm421, %v381, %v420
    %vm423 = vcmp.eq.f32.partialorder %v381, 0.0
    %v424 = vand.u32 %v381, 2147483648
    %v425 = vsel %vm423, %v424, %v422
    %v426 = vrsqrt.pop %v382
    %v427 = vmul.f32 %v382, %v426
    %vm428 = vcmp.eq.f32.partialorder %v382, inf
    %v429 = vsel %vm428, %v382, %v427
    %vm430 = vcmp.eq.f32.partialorder %v382, 0.0
    %v431 = vand.u32 %v382, 2147483648
    %v432 = vsel %vm430, %v431, %v429
    %v433 = vrsqrt.pop %v383
    %v434 = vmul.f32 %v383, %v433
    %vm435 = vcmp.eq.f32.partialorder %v383, inf
    %v436 = vsel %vm435, %v383, %v434
    %vm437 = vcmp.eq.f32.partialorder %v383, 0.0
    %v438 = vand.u32 %v383, 2147483648
    %v439 = vsel %vm437, %v438, %v436
    %v440 = vld [vmem:[%s3] sm:$0xff]
    %v441 = vld [vmem:[%s3 + $0x8] sm:$0xff]
    %v442 = vld [vmem:[%s3 + $0x10] sm:$0xff]
    %v443 = vld [vmem:[%s3 + $0x18] sm:$0xff]
    %v444 = vld [vmem:[%s3 + $0x20] sm:$0xff]
    %v445 = vld [vmem:[%s3 + $0x28] sm:$0xff]
    %v446 = vld [vmem:[%s3 + $0x30] sm:$0xff]
    %v447 = vld [vmem:[%s3 + $0x38] sm:$0xff]
    %v448 = vld [vmem:[%s3 + $0x40] sm:$0xff]
    %v449 = vld [vmem:[%s3 + $0x48] sm:$0xff]
    %v450 = vld [vmem:[%s3 + $0x50] sm:$0xff]
    %v451 = vld [vmem:[%s3 + $0x58] sm:$0xff]
    %v452 = vld [vmem:[%s3 + $0x60] sm:$0xff]
    %v453 = vld [vmem:[%s3 + $0x68] sm:$0xff]
    %v454 = vld [vmem:[%s3 + $0x70] sm:$0xff]
    %v455 = vld [vmem:[%s3 + $0x78] sm:$0xff]
    %456 = vmatprep.subr.mxu0 0.0
    %457 = vmatpush1.msra.mxu0 %v440
    %458 = vmatprep.subr.mxu0 0.0
    %459 = vmatpush1.msra.mxu0 %v441
    %460 = vmatprep.subr.mxu0 0.0
    %461 = vmatpush1.msra.mxu0 %v442
    %462 = vmatprep.subr.mxu0 0.0
    %463 = vmatpush1.msra.mxu0 %v443
    %464 = vmatprep.subr.mxu0 0.0
    %465 = vmatpush1.msra.mxu0 %v444
    %466 = vmatprep.subr.mxu0 0.0
    %467 = vmatpush1.msra.mxu0 %v445
    %468 = vmatprep.subr.mxu0 0.0
    %469 = vmatpush1.msra.mxu0 %v446
    %470 = vmatprep.subr.mxu0 0.0
    %471 = vmatpush1.msra.mxu0 %v447
    %472 = vmatprep.subr.mxu0 0.0
    %473 = vmatpush1.msra.mxu0 %v448
    %474 = vmatprep.subr.mxu0 0.0
    %475 = vmatpush1.msra.mxu0 %v449
    %476 = vmatprep.subr.mxu0 0.0
    %477 = vmatpush1.msra.mxu0 %v450
    %478 = vmatprep.subr.mxu0 0.0
    %479 = vmatpush1.msra.mxu0 %v451
    %480 = vmatprep.subr.mxu0 0.0
    %481 = vmatpush1.msra.mxu0 %v452
    %482 = vmatprep.subr.mxu0 0.0
    %483 = vmatpush1.msra.mxu0 %v453
    %484 = vmatprep.subr.mxu0 0.0
    %485 = vmatpush1.msra.mxu0 %v454
    %486 = vmatprep.subr.mxu0 0.0
    %487 = vmatpush1.msra.mxu0 %v455
    %488 = vmatprep.subr.mxu0 0.0
    %489 = vmatpush1.msra.mxu0 0.0
    %490 = vmatprep.subr.mxu0 0.0
    %491 = vmatpush1.msra.mxu0 0.0
    %492 = vmatprep.subr.mxu0 0.0
    %493 = vmatpush1.msra.mxu0 0.0
    %494 = vmatprep.subr.mxu0 0.0
    %495 = vmatpush1.msra.mxu0 0.0
    %496 = vmatprep.subr.mxu0 0.0
    %497 = vmatpush1.msra.mxu0 0.0
    %498 = vmatprep.subr.mxu0 0.0
    %499 = vmatpush1.msra.mxu0 0.0
    %500 = vmatprep.subr.mxu0 0.0
    %501 = vmatpush1.msra.mxu0 0.0
    %502 = vmatprep.subr.mxu0 0.0
    %503 = vmatpush1.msra.mxu0 0.0
    %504 = vmatprep.subr.mxu0 0.0
    %505 = vmatpush1.msra.mxu0 0.0
    %506 = vmatprep.subr.mxu0 0.0
    %507 = vmatpush1.msra.mxu0 0.0
    %508 = vmatprep.subr.mxu0 0.0
    %509 = vmatpush1.msra.mxu0 0.0
    %510 = vmatprep.subr.mxu0 0.0
    %511 = vmatpush1.msra.mxu0 0.0
    %512 = vmatprep.subr.mxu0 0.0
    %513 = vmatpush1.msra.mxu0 0.0
    %514 = vmatprep.subr.mxu0 0.0
    %515 = vmatpush1.msra.mxu0 0.0
    %516 = vmatprep.subr.mxu0 0.0
    %517 = vmatpush1.msra.mxu0 0.0
    %518 = vmatprep.subr.mxu0 0.0
    %519 = vmatpush1.msra.mxu0 0.0
    %520 = vmatprep.mubr.f32.mxu0 0.0
    %521 = vmatmul.mubr.f32.gmra.mrb[0].mxu0 %v390
    %v522 = vpop.f32.mrb[0].mxu0
    %v523 = vadd.f32 0.0, %v522
    %v524 = vpop.f32.mrb[0].mxu0
    %525 = vmatprep.mubr.f32.mxu0 0.0
    %526 = vmatmul.mubr.f32.gmra.mrb[0].mxu0 %v397
    %v527 = vpop.f32.mrb[0].mxu0
    %v528 = vadd.f32 0.0, %v527
    %v529 = vpop.f32.mrb[0].mxu0
    %530 = vmatprep.mubr.f32.mxu0 0.0
    %531 = vmatmul.mubr.f32.gmra.mrb[0].mxu0 %v404
    %v532 = vpop.f32.mrb[0].mxu0
    %v533 = vadd.f32 0.0, %v532
    %v534 = vpop.f32.mrb[0].mxu0
    %535 = vmatprep.mubr.f32.mxu0 0.0
    %536 = vmatmul.mubr.f32.gmra.mrb[0].mxu0 %v411
    %v537 = vpop.f32.mrb[0].mxu0
    %v538 = vadd.f32 0.0, %v537
    %v539 = vpop.f32.mrb[0].mxu0
    %540 = vmatprep.mubr.f32.mxu0 0.0
    %541 = vmatmul.mubr.f32.gmra.mrb[0].mxu0 %v418
    %v542 = vpop.f32.mrb[0].mxu0
    %v543 = vadd.f32 0.0, %v542
    %v544 = vpop.f32.mrb[0].mxu0
    %545 = vmatprep.mubr.f32.mxu0 0.0
    %546 = vmatmul.mubr.f32.gmra.mrb[0].mxu0 %v425
    %v547 = vpop.f32.mrb[0].mxu0
    %v548 = vadd.f32 0.0, %v547
    %v549 = vpop.f32.mrb[0].mxu0
    %550 = vmatprep.mubr.f32.mxu0 0.0
    %551 = vmatmul.mubr.f32.gmra.mrb[0].mxu0 %v432
    %v552 = vpop.f32.mrb[0].mxu0
    %v553 = vadd.f32 0.0, %v552
    %v554 = vpop.f32.mrb[0].mxu0
    %555 = vmatprep.mubr.f32.mxu0 0.0
    %556 = vmatmul.mubr.f32.gmra.mrb[0].mxu0 %v439
    %v557 = vpop.f32.mrb[0].mxu0
    %v558 = vadd.f32 0.0, %v557
    %v559 = vpop.f32.mrb[0].mxu0
    %560 = vdwg.mxu0
    %v561 = vmul.f32 %v523, %v523
    %v562 = vmul.f32 %v528, %v528
    %v563 = vmul.f32 %v533, %v533
    %v564 = vmul.f32 %v538, %v538
    %v565 = vmul.f32 %v543, %v543
    %v566 = vmul.f32 %v548, %v548
    %v567 = vmul.f32 %v553, %v553
    %v568 = vmul.f32 %v558, %v558
    %v569 = vld [vmem:[%s4] sm:$0xf]
    %vm570 = vcmask 523264
    %v572 = vsel %vm570, %v569, 0
    %574 = vmatprep.subr.mxu0 0.0
    %575 = vmatpush1.msra.mxu0 %v561
    %576 = vmatprep.subr.mxu0 0.0
    %577 = vmatpush1.msra.mxu0 %v562
    %578 = vmatprep.subr.mxu0 0.0
    %579 = vmatpush1.msra.mxu0 %v563
    %580 = vmatprep.subr.mxu0 0.0
    %581 = vmatpush1.msra.mxu0 %v564
    %582 = vmatprep.subr.mxu0 0.0
    %583 = vmatpush1.msra.mxu0 %v565
    %584 = vmatprep.subr.mxu0 0.0
    %585 = vmatpush1.msra.mxu0 %v566
    %586 = vmatprep.subr.mxu0 0.0
    %587 = vmatpush1.msra.mxu0 %v567
    %588 = vmatprep.subr.mxu0 0.0
    %589 = vmatpush1.msra.mxu0 %v568
    %590 = vmatprep.subr.mxu0 0.0
    %591 = vmatpush1.msra.mxu0 0.0
    %592 = vmatprep.subr.mxu0 0.0
    %593 = vmatpush1.msra.mxu0 0.0
    %594 = vmatprep.subr.mxu0 0.0
    %595 = vmatpush1.msra.mxu0 0.0
    %596 = vmatprep.subr.mxu0 0.0
    %597 = vmatpush1.msra.mxu0 0.0
    %598 = vmatprep.subr.mxu0 0.0
    %599 = vmatpush1.msra.mxu0 0.0
    %600 = vmatprep.subr.mxu0 0.0
    %601 = vmatpush1.msra.mxu0 0.0
    %602 = vmatprep.subr.mxu0 0.0
    %603 = vmatpush1.msra.mxu0 0.0
    %604 = vmatprep.subr.mxu0 0.0
    %605 = vmatpush1.msra.mxu0 0.0
    %606 = vmatprep.subr.mxu0 0.0
    %607 = vmatpush1.msra.mxu0 0.0
    %608 = vmatprep.subr.mxu0 0.0
    %609 = vmatpush1.msra.mxu0 0.0
    %610 = vmatprep.subr.mxu0 0.0
    %611 = vmatpush1.msra.mxu0 0.0
    %612 = vmatprep.subr.mxu0 0.0
    %613 = vmatpush1.msra.mxu0 0.0
    %614 = vmatprep.subr.mxu0 0.0
    %615 = vmatpush1.msra.mxu0 0.0
    %616 = vmatprep.subr.mxu0 0.0
    %617 = vmatpush1.msra.mxu0 0.0
    %618 = vmatprep.subr.mxu0 0.0
    %619 = vmatpush1.msra.mxu0 0.0
    %620 = vmatprep.subr.mxu0 0.0
    %621 = vmatpush1.msra.mxu0 0.0
    %622 = vmatprep.subr.mxu0 0.0
    %623 = vmatpush1.msra.mxu0 0.0
    %624 = vmatprep.subr.mxu0 0.0
    %625 = vmatpush1.msra.mxu0 0.0
    %626 = vmatprep.subr.mxu0 0.0
    %627 = vmatpush1.msra.mxu0 0.0
    %628 = vmatprep.subr.mxu0 0.0
    %629 = vmatpush1.msra.mxu0 0.0
    %630 = vmatprep.subr.mxu0 0.0
    %631 = vmatpush1.msra.mxu0 0.0
    %632 = vmatprep.subr.mxu0 0.0
    %633 = vmatpush1.msra.mxu0 0.0
    %634 = vmatprep.subr.mxu0 0.0
    %635 = vmatpush1.msra.mxu0 0.0
    %636 = vmatprep.subr.mxu0 0.0
    %637 = vmatpush1.msra.mxu0 0.0
    %638 = vmatprep.mubr.f32.mxu0 0.0
    %639 = vmatmul.mubr.f32.gmra.mrb[0].mxu0 %v572
    %v640 = vpop.f32.mrb[0].mxu0
    %v641 = vadd.f32 0.0, %v640
    %v642 = vpop.f32.mrb[0].mxu0
    %643 = vdwg.mxu0
    %v644 = vld [vmem:[%s5] sm:$0xff]
    %v645 = vld [vmem:[%s5 + $0x8] sm:$0xff]
    %v647 = vsel %vm166, %v641, 0
    %649 = vmatprep.subr.mxu0 0.0
    %650 = vmatpush1.msra.mxu0 %v644
    %651 = vmatprep.subr.mxu0 0.0
    %652 = vmatpush1.msra.mxu0 %v645
    %653 = vmatprep.subr.mxu0 0.0
    %654 = vmatpush1.msra.mxu0 0.0
    %655 = vmatprep.subr.mxu0 0.0
    %656 = vmatpush1.msra.mxu0 0.0
    %657 = vmatprep.subr.mxu0 0.0
    %658 = vmatpush1.msra.mxu0 0.0
    %659 = vmatprep.subr.mxu0 0.0
    %660 = vmatpush1.msra.mxu0 0.0
    %661 = vmatprep.subr.mxu0 0.0
    %662 = vmatpush1.msra.mxu0 0.0
    %663 = vmatprep.subr.mxu0 0.0
    %664 = vmatpush1.msra.mxu0 0.0
    %665 = vmatprep.subr.mxu0 0.0
    %666 = vmatpush1.msra.mxu0 0.0
    %667 = vmatprep.subr.mxu0 0.0
    %668 = vmatpush1.msra.mxu0 0.0
    %669 = vmatprep.subr.mxu0 0.0
    %670 = vmatpush1.msra.mxu0 0.0
    %671 = vmatprep.subr.mxu0 0.0
    %672 = vmatpush1.msra.mxu0 0.0
    %673 = vmatprep.subr.mxu0 0.0
    %674 = vmatpush1.msra.mxu0 0.0
    %675 = vmatprep.subr.mxu0 0.0
    %676 = vmatpush1.msra.mxu0 0.0
    %677 = vmatprep.subr.mxu0 0.0
    %678 = vmatpush1.msra.mxu0 0.0
    %679 = vmatprep.subr.mxu0 0.0
    %680 = vmatpush1.msra.mxu0 0.0
    %681 = vmatprep.subr.mxu0 0.0
    %682 = vmatpush1.msra.mxu0 0.0
    %683 = vmatprep.subr.mxu0 0.0
    %684 = vmatpush1.msra.mxu0 0.0
    %685 = vmatprep.subr.mxu0 0.0
    %686 = vmatpush1.msra.mxu0 0.0
    %687 = vmatprep.subr.mxu0 0.0
    %688 = vmatpush1.msra.mxu0 0.0
    %689 = vmatprep.subr.mxu0 0.0
    %690 = vmatpush1.msra.mxu0 0.0
    %691 = vmatprep.subr.mxu0 0.0
    %692 = vmatpush1.msra.mxu0 0.0
    %693 = vmatprep.subr.mxu0 0.0
    %694 = vmatpush1.msra.mxu0 0.0
    %695 = vmatprep.subr.mxu0 0.0
    %696 = vmatpush1.msra.mxu0 0.0
    %697 = vmatprep.subr.mxu0 0.0
    %698 = vmatpush1.msra.mxu0 0.0
    %699 = vmatprep.subr.mxu0 0.0
    %700 = vmatpush1.msra.mxu0 0.0
    %701 = vmatprep.subr.mxu0 0.0
    %702 = vmatpush1.msra.mxu0 0.0
    %703 = vmatprep.subr.mxu0 0.0
    %704 = vmatpush1.msra.mxu0 0.0
    %705 = vmatprep.subr.mxu0 0.0
    %706 = vmatpush1.msra.mxu0 0.0
    %707 = vmatprep.subr.mxu0 0.0
    %708 = vmatpush1.msra.mxu0 0.0
    %709 = vmatprep.subr.mxu0 0.0
    %710 = vmatpush1.msra.mxu0 0.0
    %711 = vmatprep.subr.mxu0 0.0
    %712 = vmatpush1.msra.mxu0 0.0
    %713 = vmatprep.mubr.f32.mxu0 0.0
    %714 = vmatmul.mubr.f32.gmra.mrb[0].mxu0 %v647
    %v715 = vpop.f32.mrb[0].mxu0
    %v716 = vadd.f32 0.0, %v715
    %v717 = vpop.f32.mrb[0].mxu0
    %718 = vdwg.mxu0
    %v719 = vrsqrt.pop %v716
    %v720 = vmul.f32 %v716, %v719
    %vm721 = vcmp.eq.f32.partialorder %v716, inf
    %v722 = vsel %vm721, %v716, %v720
    %vm723 = vcmp.eq.f32.partialorder %v716, 0.0
    %v724 = vand.u32 %v716, 2147483648
    %v725 = vsel %vm723, %v724, %v722
    %vm726 = vcmask 11264
    %v727 = vsel %vm726, %v725, 0.0
    %728 = vadd.xlane.f32.xlu0 %v727
    %v729 = vpop.xlane.xlu0 %728
    %v730 = vrot.slane %v729, 4
    %v731 = vadd.f32 %v729, %v730
    %v732 = vrot.slane %v731, 2
    %v733 = vadd.f32 %v731, %v732
    %v734 = vrot.slane %v733, 1
    %v735 = vadd.f32 %v733, %v734
    %s736 = vtos %v735
    %v737 = vstv %s736
    %v738 = vmul.f32 %v737, 0.125
    %vm739 = vcmask 0
    %740 = vst.msk [vmem:[#allocation2] sm:$0x1] %vm739, %v738
    // Predicated region
    $region26: #{jtfst_loss.1} parent=1 // pred_check
      _
    $region27: #{jtfst_loss.1} parent=1 // pred_check_branch
      %742 = sbr.rel (0) target = $region29
    $region28: #{jtfst_loss.1} parent=1 // pred_region
      %s744 = ssub.s32 16, 16
      %745 = vsyncadd [#allocation3], %s744
      %s747 = sshll.u32 [#allocation2], 4
      %s748 = int_to_ptr.vmem [resolvable:$true] %s747
      %750 = dma.vmem_to_hbm [thread:$0]  %s748, 16, %s6, [#allocation3]
    $region29: #{jtfst_loss.1} parent=1 // pred_fallthru
      _
    // Predicated region
    $region30: #{jtfst_loss.1} parent=1 // pred_check
      _
    $region31: #{jtfst_loss.1} parent=1 // pred_check_branch
      %752 = sbr.rel (0) target = $region33
    $region32: #{jtfst_loss.1} parent=1 // pred_region
      %753 = dma.done [#allocation3], 16
    $region33: #{jtfst_loss.1} parent=1 // pred_fallthru
      _
    %754 = vsyncpa [#allocation3], 1

</llo_original>
